<compile_context>
chip_gen: v5e
topology: v5e:2x2
jax: 0.10.0
libtpu: 0.0.40
codegen_flags: <defaults>
</compile_context>

<pallas_src>
import functools

import jax
import jax.numpy as jnp
import numpy as np
from jax.experimental import pallas as pl
from jax.experimental.pallas import tpu as pltpu


def _resize_conv_kernel(x_ref, w_ref, o_ref, *, apply_relu):
    # x_ref: (TM, E)   w_ref: (E, H)   o_ref: (TM, H)
    y = jnp.dot(x_ref[...], w_ref[...], preferred_element_type=jnp.float32)
    if apply_relu:
        y = jnp.maximum(y, 0.0)
    o_ref[...] = y.astype(o_ref.dtype)


def _resize_conv_bias_kernel(x_ref, w_ref, b_ref, o_ref, *, apply_relu):
    # x_ref: (TM, E)   w_ref: (E, H)   b_ref: (1, H)   o_ref: (TM, H)
    y = jnp.dot(x_ref[...], w_ref[...], preferred_element_type=jnp.float32)
    y = y + b_ref[...].astype(jnp.float32)
    if apply_relu:
        y = jnp.maximum(y, 0.0)
    o_ref[...] = y.astype(o_ref.dtype)


def resize_conv(x, conv_weight, conv_bias=None, activation=False, row_tile=512):
    """ResizeConv forward.

    x:           (N, L, E)  -- same layout the PyTorch module receives.
    conv_weight: (H, E, 1)  -- nn.Conv1d(embed_dim=E, hidden=H, kernel_size=1) weight.
    conv_bias:   (H,) or None.
    Returns (N, L, H), ReLU applied iff activation=True.
    """
    N, L, E = x.shape
    H = conv_weight.shape[0]

    # (H, E, 1) -> (E, H) so the kernel matmul is (rows, E) @ (E, H).
    w = jnp.transpose(conv_weight[:, :, 0], (1, 0))

    rows = N * L
    x2 = x.reshape(rows, E)  # contiguous reshape, no data movement

    # Row tile: multiple of 8 sublanes unless it spans the whole array.
    tm = min(row_tile, rows)
    if tm != rows:
        tm = max(8, (tm // 8) * 8)
    padded_rows = pl.cdiv(rows, tm) * tm
    if padded_rows != rows:
        x2 = jnp.pad(x2, ((0, padded_rows - rows), (0, 0)))

    grid = (padded_rows // tm,)

    in_specs = [
        pl.BlockSpec((tm, E), lambda i: (i, 0)),   # activations, tiled over rows
        pl.BlockSpec((E, H), lambda i: (0, 0)),    # weight, constant block
    ]
    args = (x2, w)
    if conv_bias is not None:
        in_specs.append(pl.BlockSpec((1, H), lambda i: (0, 0)))
        args = args + (conv_bias.reshape(1, H),)
        kernel = functools.partial(_resize_conv_bias_kernel, apply_relu=activation)
    else:
        kernel = functools.partial(_resize_conv_kernel, apply_relu=activation)

    out = pl.pallas_call(
        kernel,
        out_shape=jax.ShapeDtypeStruct((padded_rows, H), x.dtype),
        grid_spec=pltpu.PrefetchScalarGridSpec(
            num_scalar_prefetch=0,
            grid=grid,
            in_specs=in_specs,
            out_specs=pl.BlockSpec((tm, H), lambda i: (i, 0)),
        ),
        compiler_params=pltpu.CompilerParams(
            dimension_semantics=("parallel",)),
    )(*args)

    if padded_rows != rows:
        out = out[:rows]
    return out.reshape(N, L, H)


def reference(x, conv_weight, conv_bias, activation):
    """Pure-JAX reference with exact PyTorch ResizeConv semantics."""
    y = jnp.einsum("nle,he->nlh", x.astype(jnp.float32),
                   conv_weight[:, :, 0].astype(jnp.float32))
    if conv_bias is not None:
        y = y + conv_bias[None, None, :].astype(jnp.float32)
    if activation:
        y = jnp.maximum(y, 0.0)
    return y.astype(x.dtype)


if __name__ == "__main__":
    # Small shapes consistent with the module: x is (batch, seq, embed_dim).
    N, L, E, H = 2, 16, 32, 64

    key = jax.random.PRNGKey(0)
    k1, k2, k3 = jax.random.split(key, 3)

    x = jax.random.normal(k1, (N, L, E), dtype=jnp.float32)
    # nn.Conv1d(E, H, kernel_size=1) parameter shapes: weight (H, E, 1), bias (H,)
    conv_w = 0.1 * jax.random.normal(k2, (H, E, 1), dtype=jnp.float32)
    conv_b = 0.1 * jax.random.normal(k3, (H,), dtype=jnp.float32)

    # Path 1: module default bias=False, activation=True (ReLU).
    out = jax.block_until_ready(resize_conv(x, conv_w, None, activation=True))
    ref = jax.block_until_ready(reference(x, conv_w, None, True))
    np.testing.assert_allclose(np.asarray(out), np.asarray(ref), rtol=1e-5, atol=1e-5)

    # Path 2: bias=True, activation=False.
    out2 = jax.block_until_ready(resize_conv(x, conv_w, conv_b, activation=False))
    ref2 = jax.block_until_ready(reference(x, conv_w, conv_b, False))
    np.testing.assert_allclose(np.asarray(out2), np.asarray(ref2), rtol=1e-5, atol=1e-5)

    print("KERNEL_OK")
</pallas_src>

<mosaic_0001>
module attributes {stable_mosaic.version = 11 : i64} {
  func.func @_resize_conv_kernel(%arg0: i32, %arg1: memref<32x32xf32, #tpu.memory_space<vmem>>, %arg2: memref<32x64xf32, #tpu.memory_space<vmem>>, %arg3: memref<32x64xf32, #tpu.memory_space<vmem>>) attributes {dimension_semantics = [#tpu.dimension_semantics<parallel>], iteration_bounds = array<i64: 1>, scalar_prefetch = 0 : i64, scratch_operands = 0 : i64, tpu.core_type = #tpu.core_type<tc>, window_params = [{transform_indices = @transform_0, window_bounds = array<i64: 32, 32>}, {pipeline_mode = #tpu.pipeline_mode<synchronous>, transform_indices = @transform_1, window_bounds = array<i64: 32, 64>}, {transform_indices = @transform_2, window_bounds = array<i64: 32, 64>}]} {
    %c0 = arith.constant 0 : index
    %c0_0 = arith.constant 0 : index
    %0 = vector.load %arg1[%c0, %c0_0] : memref<32x32xf32, #tpu.memory_space<vmem>>, vector<32x32xf32>
    %c0_1 = arith.constant 0 : index
    %c0_2 = arith.constant 0 : index
    %1 = vector.load %arg2[%c0_1, %c0_2] : memref<32x64xf32, #tpu.memory_space<vmem>>, vector<32x64xf32>
    %cst = arith.constant dense<0.000000e+00> : vector<32x64xf32>
    %2 = tpu.matmul %0, %1, %cst {dimension_numbers = #tpu.dot_dimension_numbers<[1], [0], [0], [1], [0, 0, 1, 1], [], []>} : vector<32x32xf32>, vector<32x64xf32>, vector<32x64xf32> -> vector<32x64xf32>
    %cst_3 = arith.constant 0.000000e+00 : f32
    %3 = vector.broadcast %cst_3 : f32 to vector<32x64xf32>
    %4 = arith.maximumf %2, %3 : vector<32x64xf32>
    %c0_4 = arith.constant 0 : index
    %c0_5 = arith.constant 0 : index
    %5 = vector.load %arg3[%c0_4, %c0_5] : memref<32x64xf32, #tpu.memory_space<vmem>>, vector<32x64xf32>
    tpu.vector_store %arg3[%c0_4, %c0_5], %4 {strides = array<i32>} : memref<32x64xf32, #tpu.memory_space<vmem>>, vector<32x64xf32>,
    return
  }
  func.func @transform_0(%arg0: i32) -> (i32, i32) {
    %c0_i32 = arith.constant 0 : i32
    %c0_i32_0 = arith.constant 0 : i32
    return %arg0, %c0_i32 : i32, i32
  }
  func.func @transform_1(%arg0: i32) -> (i32, i32) {
    %c0_i32 = arith.constant 0 : i32
    %c0_i32_0 = arith.constant 0 : i32
    %c0_i32_1 = arith.constant 0 : i32
    return %c0_i32, %c0_i32_0 : i32, i32
  }
  func.func @transform_2(%arg0: i32) -> (i32, i32) {
    %c0_i32 = arith.constant 0 : i32
    %c0_i32_0 = arith.constant 0 : i32
    return %arg0, %c0_i32 : i32, i32
  }
}

</mosaic_0001>

<llo_original>
// kernel: tpu_custom_call.1
$region0: #{tpu_custom_call.1}
  #allocation0 [shape = 'u32[]', space=smem, size = 0x4, offset = 0x4, fixed_abs, tag = 'smem constant byte address 0x4 - core index']
  #allocation1 [shape = 'u32[72,128]{1,0:T(1,128)}', space=vmem, size = 0x9000, scoped, tag = 'internal scratch']
  %s0 = inlined_call_operand.hbm [shape: f32[32,32], index: 0, kind: input, shape index: {}]
  %s1 = inlined_call_operand.hbm [shape: f32[32,64], index: 1, kind: input, shape index: {}]
  %s2 = inlined_call_operand.hbm [shape: f32[32,64], index: 2, kind: output, shape index: {}]
  %s3 = sld [smem:[#allocation0]]
  $region26: #{tpu_custom_call.1} parent=0
    _
  %s5 = ssub.s32 1, %s3
  %s6 = scalar_select 0, %s5, %s3
  $region1: #{tpu_custom_call.1} parent=0
    #allocation2 [shape = 'u8[16384]{0}', space=vmem, size = 0x4000, scoped, tag = 'input window, operand 0, single buffered']
    #allocation3 [shape = 's32[1]{0}', space=sflag, size = 0x4, scoped, tag = 'scoped memory for tpu_custom_call.1']
    #allocation4 [shape = 's32[1]{0}', space=sflag, size = 0x4, scoped, tag = 'scoped memory for tpu_custom_call.1']
    #allocation5 [shape = 'u8[16384]{0}', space=vmem, size = 0x4000, scoped, tag = 'input window, operand 1, single buffered']
    #allocation6 [shape = 's32[1]{0}', space=sflag, size = 0x4, scoped, tag = 'scoped memory for tpu_custom_call.1']
    #allocation7 [shape = 'u8[16384]{0}', space=vmem, size = 0x4000, scoped, tag = 'output window, operand 0, single buffered']
    %7 = vsyncpa [#allocation3], 0
    %8 = vsyncpa [#allocation6], 0
    %9 = vsyncpa [#allocation4], 0
    // Predicated region
    $region2: #{tpu_custom_call.1} parent=1 // pred_check
      _
    $region3: #{tpu_custom_call.1} parent=1 // pred_check_branch
      %11 = sbr.rel (0) target = $region5
    $region4: #{tpu_custom_call.1} parent=1 // pred_region
      %13 = vsyncadd [#allocation3], 0
      %s14 = sshll.u32 %s0, 4
      %s15 = int_to_ptr.hbm [resolvable:$true] %s14
      %s16 = sshll.u32 [#allocation2], 4
      %s17 = int_to_ptr.vmem [resolvable:$true] %s16
      %22 = dma.hbm_to_vmem [thread:$0]  %s15, 512, %s17, [#allocation3], 128, 128, 8
    $region5: #{tpu_custom_call.1} parent=1 // pred_fallthru
      _
    // Predicated region
    $region6: #{tpu_custom_call.1} parent=1 // pred_check
      _
    $region7: #{tpu_custom_call.1} parent=1 // pred_check_branch
      %24 = sbr.rel (0) target = $region9
    $region8: #{tpu_custom_call.1} parent=1 // pred_region
      %26 = vsyncadd [#allocation6], 0
      %s27 = sshll.u32 %s1, 4
      %s28 = int_to_ptr.hbm [resolvable:$true] %s27
      %s29 = sshll.u32 [#allocation5], 4
      %s30 = int_to_ptr.vmem [resolvable:$true] %s29
      %35 = dma.hbm_to_vmem [thread:$0]  %s28, 512, %s30, [#allocation6], 128, 128, 8
    $region9: #{tpu_custom_call.1} parent=1 // pred_fallthru
      _
    // Predicated region
    $region10: #{tpu_custom_call.1} parent=1 // pred_check
      _
    $region11: #{tpu_custom_call.1} parent=1 // pred_check_branch
      %37 = sbr.rel (0) target = $region13
    $region12: #{tpu_custom_call.1} parent=1 // pred_region
      %39 = dma.done [#allocation3], 512
    $region13: #{tpu_custom_call.1} parent=1 // pred_fallthru
      _
    // Predicated region
    $region14: #{tpu_custom_call.1} parent=1 // pred_check
      _
    $region15: #{tpu_custom_call.1} parent=1 // pred_check_branch
      %41 = sbr.rel (0) target = $region17
    $region16: #{tpu_custom_call.1} parent=1 // pred_region
      %43 = dma.done [#allocation6], 512
    $region17: #{tpu_custom_call.1} parent=1 // pred_fallthru
      _
    %v44 = vld [vmem:[#allocation2] sm:$0xff]
    %v45 = vld [vmem:[#allocation2 + $0x8] sm:$0xff]
    %v46 = vld [vmem:[#allocation2 + $0x10] sm:$0xff]
    %v47 = vld [vmem:[#allocation2 + $0x18] sm:$0xff]
    %v48 = vld [vmem:[#allocation5] sm:$0xff]
    %v49 = vld [vmem:[#allocation5 + $0x8] sm:$0xff]
    %v50 = vld [vmem:[#allocation5 + $0x10] sm:$0xff]
    %v51 = vld [vmem:[#allocation5 + $0x18] sm:$0xff]
    %vm52 = vcmask 261120
    %v54 = vsel %vm52, %v44, 0
    %v57 = vsel %vm52, %v45, 0
    %v60 = vsel %vm52, %v46, 0
    %v63 = vsel %vm52, %v47, 0
    %65 = vmatpush.msra.mxu0 0.0
    %66 = vmatpush.msra.mxu0 0.0
    %67 = vmatpush.msra.mxu0 0.0
    %68 = vmatpush.msra.mxu0 0.0
    %69 = vmatpush.msra.mxu0 0.0
    %70 = vmatpush.msra.mxu0 0.0
    %71 = vmatpush.msra.mxu0 0.0
    %72 = vmatpush.msra.mxu0 0.0
    %73 = vmatpush.msra.mxu0 0.0
    %74 = vmatpush.msra.mxu0 0.0
    %75 = vmatpush.msra.mxu0 0.0
    %76 = vmatpush.msra.mxu0 0.0
    %77 = vmatpush.msra.mxu0 %v51
    %78 = vmatpush.msra.mxu0 %v50
    %79 = vmatpush.msra.mxu0 %v49
    %80 = vmatpush.msra.mxu0 %v48
    %81 = vmatmul.f32.gmra.mxu0 %v54
    %v82 = vpop.f32.mrf.mxu0
    %v83 = vadd.f32 0.0, %v82
    %84 = vmatmul.f32.gmra.mxu0 %v57
    %v85 = vpop.f32.mrf.mxu0
    %v86 = vadd.f32 0.0, %v85
    %87 = vmatmul.f32.gmra.mxu0 %v60
    %v88 = vpop.f32.mrf.mxu0
    %v89 = vadd.f32 0.0, %v88
    %90 = vmatmul.f32.gmra.mxu0 %v63
    %v91 = vpop.f32.mrf.mxu0
    %v92 = vadd.f32 0.0, %v91
    %93 = vdwg.mxu0
    %v94 = vmax.f32 %v83, 0.0
    %v95 = vmax.f32 %v86, 0.0
    %v96 = vmax.f32 %v89, 0.0
    %v97 = vmax.f32 %v92, 0.0
    %vm98 = vcmask 523264
    %99 = vst.msk [vmem:[#allocation7] sm:$0xff] %vm98, %v94
    %100 = vst.msk [vmem:[#allocation7 + $0x8] sm:$0xff] %vm98, %v95
    %101 = vst.msk [vmem:[#allocation7 + $0x10] sm:$0xff] %vm98, %v96
    %102 = vst.msk [vmem:[#allocation7 + $0x18] sm:$0xff] %vm98, %v97
    // Predicated region
    $region18: #{tpu_custom_call.1} parent=1 // pred_check
      _
    $region19: #{tpu_custom_call.1} parent=1 // pred_check_branch
      %104 = sbr.rel (0) target = $region21
    $region20: #{tpu_custom_call.1} parent=1 // pred_region
      %106 = vsyncadd [#allocation4], 0
      %s107 = sshll.u32 [#allocation7], 4
      %s108 = int_to_ptr.vmem [resolvable:$true] %s107
      %s109 = sshll.u32 %s2, 4
      %s110 = int_to_ptr.hbm [resolvable:$true] %s109
      %115 = dma.vmem_to_hbm [thread:$0]  %s108, 512, %s110, [#allocation4], 128, 128, 8
    $region21: #{tpu_custom_call.1} parent=1 // pred_fallthru
      _
    // Predicated region
    $region22: #{tpu_custom_call.1} parent=1 // pred_check
      _
    $region23: #{tpu_custom_call.1} parent=1 // pred_check_branch
      %117 = sbr.rel (0) target = $region25
    $region24: #{tpu_custom_call.1} parent=1 // pred_region
      %119 = dma.done [#allocation4], 512
    $region25: #{tpu_custom_call.1} parent=1 // pred_fallthru
      _
    %120 = vsyncpa [#allocation3], 1
    %121 = vsyncpa [#allocation6], 1
    %122 = vsyncpa [#allocation4], 1

</llo_original>
